<compile_context>
chip_gen: v7x
topology: tpu7x:2x2x1
jax: 0.10.0
libtpu: 0.0.40
codegen_flags: <defaults>
</compile_context>

<pallas_src>
import jax
import jax.numpy as jnp
from jax import lax
from jax.experimental import pallas as pl
from jax.experimental.pallas import tpu as pltpu

NUM_ACTIONS = 2
HIDDEN = 128
EPS = 1e-5


def price_kernel(x_ref, p_ref, o_ref):
    # Entire problem fits in a single VMEM tile; one grid step does everything.
    B, F = x_ref.shape
    x = x_ref[...]                                            # (B, F) f32 (wrapper casts)

    # --- BatchNorm1d statistics (training mode, biased var) ---
    # E[x] and E[x^2] are independent sublane reductions -> overlap on the XLU.
    n_inv = 1.0 / B                                           # static Python constant
    mean = jnp.sum(x, axis=0, keepdims=True) * n_inv          # (1, F)
    ex2 = jnp.sum(x * x, axis=0, keepdims=True) * n_inv       # (1, F)
    var = ex2 - mean * mean                                   # biased batch var
    z = (x - mean) * lax.rsqrt(var + EPS)                     # (B, F); gamma/beta folded into W2'/b2'

    # --- fc2 + ReLU: K=F(=2) contraction on the VPU as broadcast mul-adds ---
    h = p_ref[F:F + 1, :]                                     # b2' (1, H)
    for f in range(F):                                        # static unroll, F is tiny
        h = h + z[:, f:f + 1] * p_ref[f:f + 1, :]             # (B, H)
    h = jnp.maximum(h, 0.0)

    # --- fc3 + Hardsigmoid: N=1 output via VPU multiply + XLU lane reduction ---
    w3_row = p_ref[F + 1:F + 2, :]                            # (1, H)
    b3 = p_ref[F + 2:F + 3, 0:1]                              # (1, 1)
    p = jnp.sum(h * w3_row, axis=-1, keepdims=True) + b3      # (B, 1)
    # Hardsigmoid: clip(p/6 + 0.5, 0, 1) -- multiply, no divide.
    o_ref[...] = jnp.clip(p * (1.0 / 6.0) + 0.5, 0.0, 1.0).astype(o_ref.dtype)


def pack_params(gamma, beta, w2, b2, w3, b3):
    """Pack params into one (8, HIDDEN) f32 slab (single DMA), folding BN affine.

    Row layout (F = num_actions, H = HIDDEN):
      rows 0..F-1 : W2'[f, :] = gamma_f * W2[f, :]
      row  F      : b2'       = b2 + sum_f beta_f * W2[f, :]
      row  F+1    : W3[:, 0]  (Linear(H, 1) weight as a lane row)
      row  F+2    : [b3, 0, ...]
      remaining rows zero-padded to a multiple of 8 sublanes.
    """
    F, H = w2.shape
    gamma = gamma.reshape(F).astype(jnp.float32)
    beta = beta.reshape(F).astype(jnp.float32)
    w2 = w2.astype(jnp.float32)
    b2 = b2.reshape(H).astype(jnp.float32)
    w3_row = w3.reshape(H).astype(jnp.float32)
    b3_row = jnp.pad(b3.reshape(-1).astype(jnp.float32), (0, H - b3.size))

    w2_folded = w2 * gamma[:, None]                           # (F, H)
    b2_folded = b2 + beta @ w2                                # (H,)

    slab = jnp.concatenate(
        [w2_folded, b2_folded[None, :], w3_row[None, :], b3_row[None, :]], axis=0)
    pad_rows = (-slab.shape[0]) % 8
    if pad_rows:
        slab = jnp.pad(slab, ((0, pad_rows), (0, 0)))
    return slab


def make_price_network_forward(gamma, beta, w2, b2, w3, b3):
    """Build the slab once (module-init time) and return a jitted forward(s)."""
    params = pack_params(gamma, beta, w2, b2, w3, b3)         # (8, HIDDEN) f32, built once
    R, H = params.shape
    F = w2.shape[0]

    @jax.jit
    def forward(s):
        B = s.shape[0]
        x = s.reshape(B, -1).astype(jnp.float32)              # nn.Flatten + cast
        vmem = pl.BlockSpec(memory_space=pltpu.MemorySpace.VMEM)
        cost = pl.CostEstimate(
            flops=2 * B * F * H + 2 * B * H + 8 * B * F,
            transcendentals=F,                                # rsqrt per feature
            bytes_accessed=(B * F + R * H + B) * 4,
        )
        return pl.pallas_call(
            price_kernel,
            out_shape=jax.ShapeDtypeStruct((B, 1), jnp.float32),
            in_specs=[vmem, vmem],
            out_specs=vmem,
            cost_estimate=cost,
        )(x, params)
        # NOTE: if B ever scales into the hundreds+, switch to a lane-dense (1, B)
        # output (transpose in the wrapper) and chunk the batch axis with a
        # "parallel" grid dim (two-pass stats) to respect v7x's 64 MiB VMEM.

    return forward


def reference_forward(s, gamma, beta, w2, b2, w3, b3):
    x = s.reshape(s.shape[0], -1).astype(jnp.float32)
    mean = jnp.mean(x, axis=0, keepdims=True)
    var = jnp.mean((x - mean) ** 2, axis=0, keepdims=True)    # biased (training-mode BN)
    xn = (x - mean) / jnp.sqrt(var + EPS) * gamma.reshape(1, -1) + beta.reshape(1, -1)
    h = jnp.maximum(xn @ w2 + b2, 0.0)
    p = h @ w3 + b3
    return jnp.clip(p / 6.0 + 0.5, 0.0, 1.0)


if __name__ == "__main__":
    key = jax.random.PRNGKey(0)
    k_x, k_g, k_b, k_w2, k_b2, k_w3, k_b3 = jax.random.split(key, 7)

    B = 8  # batch (>1 required by BatchNorm1d training-mode semantics)
    s = jax.random.normal(k_x, (B, NUM_ACTIONS), dtype=jnp.float32)

    # Deterministic synthetic parameters (shapes match the PyTorch module).
    gamma = 1.0 + 0.1 * jax.random.normal(k_g, (NUM_ACTIONS,), jnp.float32)  # BN weight
    beta = 0.1 * jax.random.normal(k_b, (NUM_ACTIONS,), jnp.float32)         # BN bias
    w2 = 0.1 * jax.random.normal(k_w2, (NUM_ACTIONS, HIDDEN), jnp.float32)
    b2 = 0.1 * jax.random.normal(k_b2, (1, HIDDEN), jnp.float32)
    w3 = 0.1 * jax.random.normal(k_w3, (HIDDEN, 1), jnp.float32)
    b3 = 0.1 * jax.random.normal(k_b3, (1, 1), jnp.float32)

    forward = make_price_network_forward(gamma, beta, w2, b2, w3, b3)  # slab built once
    p_out = forward(s)
    jax.block_until_ready(p_out)

    ref = reference_forward(s, gamma, beta, w2, b2, w3, b3)
    assert p_out.shape == (B, 1)
    assert jnp.allclose(p_out, ref, atol=1e-4, rtol=1e-4), (p_out, ref)

    print("KERNEL_OK")
</pallas_src>

<mosaic_0001>
module attributes {stable_mosaic.version = 11 : i64} {
  func.func @price_kernel(%arg0: memref<8x2xf32, #tpu.memory_space<vmem>>, %arg1: memref<8x128xf32, #tpu.memory_space<vmem>>, %arg2: memref<8x1xf32, #tpu.memory_space<vmem>>) attributes {dimension_semantics = [], scalar_prefetch = 0 : i64, scratch_operands = 0 : i64, tpu.core_type = #tpu.core_type<tc>} {
    %c0 = arith.constant 0 : index
    %c0_0 = arith.constant 0 : index
    %0 = vector.load %arg0[%c0, %c0_0] : memref<8x2xf32, #tpu.memory_space<vmem>>, vector<8x2xf32>
    %cst = arith.constant dense<0.000000e+00> : vector<2xf32>
    %1 = vector.multi_reduction <add>, %0, %cst [0] : vector<8x2xf32> to vector<2xf32>
    %2 = vector.shape_cast %1 : vector<2xf32> to vector<1x2xf32>
    %cst_1 = arith.constant 1.250000e-01 : f32
    %3 = vector.broadcast %cst_1 : f32 to vector<1x2xf32>
    %4 = arith.mulf %2, %3 : vector<1x2xf32>
    %5 = arith.mulf %0, %0 : vector<8x2xf32>
    %cst_2 = arith.constant dense<0.000000e+00> : vector<2xf32>
    %6 = vector.multi_reduction <add>, %5, %cst_2 [0] : vector<8x2xf32> to vector<2xf32>
    %7 = vector.shape_cast %6 : vector<2xf32> to vector<1x2xf32>
    %cst_3 = arith.constant 1.250000e-01 : f32
    %8 = vector.broadcast %cst_3 : f32 to vector<1x2xf32>
    %9 = arith.mulf %7, %8 : vector<1x2xf32>
    %10 = arith.mulf %4, %4 : vector<1x2xf32>
    %11 = arith.subf %9, %10 : vector<1x2xf32>
    %12 = vector.broadcast %4 : vector<1x2xf32> to vector<8x2xf32>
    %13 = arith.subf %0, %12 : vector<8x2xf32>
    %cst_4 = arith.constant 9.99999974E-6 : f32
    %14 = vector.broadcast %cst_4 : f32 to vector<1x2xf32>
    %15 = arith.addf %11, %14 : vector<1x2xf32>
    %16 = math.rsqrt %15 : vector<1x2xf32>
    %17 = vector.broadcast %16 : vector<1x2xf32> to vector<8x2xf32>
    %18 = arith.mulf %13, %17 : vector<8x2xf32>
    %c2 = arith.constant 2 : index
    %c0_5 = arith.constant 0 : index
    %19 = vector.load %arg1[%c2, %c0_5] : memref<8x128xf32, #tpu.memory_space<vmem>>, vector<1x128xf32>
    %20 = vector.extract_strided_slice %18 {offsets = [0, 0], sizes = [8, 1], strides = [1, 1]} : vector<8x2xf32> to vector<8x1xf32>
    %c0_6 = arith.constant 0 : index
    %c0_7 = arith.constant 0 : index
    %21 = vector.load %arg1[%c0_6, %c0_7] : memref<8x128xf32, #tpu.memory_space<vmem>>, vector<1x128xf32>
    %22 = vector.broadcast %20 : vector<8x1xf32> to vector<8x128xf32>
    %23 = vector.broadcast %21 : vector<1x128xf32> to vector<8x128xf32>
    %24 = arith.mulf %22, %23 : vector<8x128xf32>
    %25 = vector.broadcast %19 : vector<1x128xf32> to vector<8x128xf32>
    %26 = arith.addf %25, %24 : vector<8x128xf32>
    %27 = vector.extract_strided_slice %18 {offsets = [0, 1], sizes = [8, 1], strides = [1, 1]} : vector<8x2xf32> to vector<8x1xf32>
    %c1 = arith.constant 1 : index
    %c0_8 = arith.constant 0 : index
    %28 = vector.load %arg1[%c1, %c0_8] : memref<8x128xf32, #tpu.memory_space<vmem>>, vector<1x128xf32>
    %29 = vector.broadcast %27 : vector<8x1xf32> to vector<8x128xf32>
    %30 = vector.broadcast %28 : vector<1x128xf32> to vector<8x128xf32>
    %31 = arith.mulf %29, %30 : vector<8x128xf32>
    %32 = arith.addf %26, %31 : vector<8x128xf32>
    %cst_9 = arith.constant 0.000000e+00 : f32
    %33 = vector.broadcast %cst_9 : f32 to vector<8x128xf32>
    %34 = arith.maximumf %32, %33 : vector<8x128xf32>
    %c3 = arith.constant 3 : index
    %c0_10 = arith.constant 0 : index
    %35 = vector.load %arg1[%c3, %c0_10] : memref<8x128xf32, #tpu.memory_space<vmem>>, vector<1x128xf32>
    %c4 = arith.constant 4 : index
    %c0_11 = arith.constant 0 : index
    %36 = vector.load %arg1[%c4, %c0_11] : memref<8x128xf32, #tpu.memory_space<vmem>>, vector<1x1xf32>
    %37 = vector.broadcast %35 : vector<1x128xf32> to vector<8x128xf32>
    %38 = arith.mulf %34, %37 : vector<8x128xf32>
    %cst_12 = arith.constant dense<0.000000e+00> : vector<8xf32>
    %39 = vector.multi_reduction <add>, %38, %cst_12 [1] : vector<8x128xf32> to vector<8xf32>
    %40 = vector.shape_cast %39 : vector<8xf32> to vector<8x1xf32>
    %41 = vector.broadcast %36 : vector<1x1xf32> to vector<8x1xf32>
    %42 = arith.addf %40, %41 : vector<8x1xf32>
    %cst_13 = arith.constant 0.166666672 : f32
    %43 = vector.broadcast %cst_13 : f32 to vector<8x1xf32>
    %44 = arith.mulf %42, %43 : vector<8x1xf32>
    %cst_14 = arith.constant 5.000000e-01 : f32
    %45 = vector.broadcast %cst_14 : f32 to vector<8x1xf32>
    %46 = arith.addf %44, %45 : vector<8x1xf32>
    %cst_15 = arith.constant 0.000000e+00 : f32
    %cst_16 = arith.constant 1.000000e+00 : f32
    %47 = vector.broadcast %cst_15 : f32 to vector<8x1xf32>
    %48 = arith.maximumf %47, %46 : vector<8x1xf32>
    %49 = vector.broadcast %cst_16 : f32 to vector<8x1xf32>
    %50 = arith.minimumf %49, %48 : vector<8x1xf32>
    %c0_17 = arith.constant 0 : index
    %c0_18 = arith.constant 0 : index
    %51 = vector.load %arg2[%c0_17, %c0_18] : memref<8x1xf32, #tpu.memory_space<vmem>>, vector<8x1xf32>
    tpu.vector_store %arg2[%c0_17, %c0_18], %50 {strides = array<i32>} : memref<8x1xf32, #tpu.memory_space<vmem>>, vector<8x1xf32>,
    return
  }
}

</mosaic_0001>

<llo_original>
// kernel: forward.1
$region0: #{forward.1}
  #allocation0 [shape = 'u32[]', space=smem, size = 0x4, offset = 0x4, fixed_abs, tag = 'smem constant byte address 0x4 - core index']
  #allocation1 [shape = 'u32[144,128]{1,0:T(1,128)}', space=vmem, size = 0x12000, scoped, tag = 'internal scratch']
  %s0 = inlined_call_operand.vmem [shape: f32[8,2], index: 0, kind: input, shape index: {}]
  %s1 = inlined_call_operand.vmem [shape: f32[8,128], index: 1, kind: input, shape index: {}]
  %s2 = inlined_call_operand.vmem [shape: f32[8,1], index: 2, kind: output, shape index: {}]
  %s3 = sld [smem:[#allocation0]]
  $region18: #{forward.1} parent=0
    _
  %s5 = ssub.s32 1, %s3
  %s6 = scalar_select 0, %s5, %s3
  // Predicated region
  $region2: #{forward.1} parent=0 // pred_check
    _
  $region3: #{forward.1} parent=0 // pred_check_branch
    %8 = sbr.rel (0) target = $region5
  $region4: #{forward.1} parent=0 // pred_region
    _
  $region5: #{forward.1} parent=0 // pred_fallthru
    _
  // Predicated region
  $region6: #{forward.1} parent=0 // pred_check
    _
  $region7: #{forward.1} parent=0 // pred_check_branch
    %10 = sbr.rel (0) target = $region9
  $region8: #{forward.1} parent=0 // pred_region
    _
  $region9: #{forward.1} parent=0 // pred_fallthru
    _
  %v11 = vld [vmem:[%s0] sm:$0xff]
  %vm12 = vcmask 15360
  %v13 = vsel %vm12, %v11, 0.0
  %v14 = vrot.slane %v13, 4
  %v15 = vadd.f32 %v13, %v14
  %v16 = vrot.slane %v15, 2
  %v17 = vadd.f32 %v15, %v16
  %v18 = vrot.slane %v17, 1
  %v19 = vadd.f32 %v17, %v18
  %v20 = vmul.f32 %v19, 0.125
  %v21 = vmul.f32 %v11, %v11
  %v22 = vsel %vm12, %v21, 0.0
  %v23 = vrot.slane %v22, 4
  %v24 = vadd.f32 %v22, %v23
  %v25 = vrot.slane %v24, 2
  %v26 = vadd.f32 %v24, %v25
  %v27 = vrot.slane %v26, 1
  %v28 = vadd.f32 %v26, %v27
  %v29 = vmul.f32 %v28, 0.125
  %v30 = vmul.f32 %v20, %v20
  %v31 = vsub.f32 %v29, %v30
  %v32 = vsub.f32 %v11, %v20
  %v33 = vadd.f32 %v31, 1e-05
  %v34 = vrsqrt.pop %v33
  %v35 = vmul.f32 %v32, %v34
  %v36 = vld [vmem:[%s1 + $0x2] sm:$0x1]
  %v37 = vld [vmem:[%s1] sm:$0x1]
  %39 = vset.pattern.permute.xlu0 0
  %40 = vperm.xlu0 %39, %v35
  %v41 = vpop.permute.xlu0 %40
  %v43 = vlaneseq
  %v44 = vshrl.u32 %v43, 7
  %v45 = vsub.s32 0, %v44
  %v46 = vrot.slane %v37, %v45
  %v47 = vmul.f32 %v41, %v46
  %v48 = vlaneseq
  %v49 = vshrl.u32 %v48, 7
  %v50 = vsub.s32 0, %v49
  %v51 = vrot.slane %v36, %v50
  %v52 = vadd.f32 %v51, %v47
  %v53 = vld [vmem:[%s1 + $0x1] sm:$0x1]
  %54 = vset.pattern.permute.xlu0 1
  %55 = vperm.xlu0 %54, %v35
  %v56 = vpop.permute.xlu0 %55
  %v58 = vlaneseq
  %v59 = vshrl.u32 %v58, 7
  %v60 = vsub.s32 0, %v59
  %v61 = vrot.slane %v53, %v60
  %v62 = vmul.f32 %v56, %v61
  %v63 = vadd.f32 %v52, %v62
  %v64 = vmax.f32 %v63, 0.0
  %v65 = vld [vmem:[%s1 + $0x3] sm:$0x1]
  %v66 = vld [vmem:[%s1 + $0x4] sm:$0x1]
  %v67 = vlaneseq
  %v68 = vshrl.u32 %v67, 7
  %v69 = vsub.s32 0, %v68
  %v70 = vrot.slane %v65, %v69
  %v71 = vmul.f32 %v64, %v70
  %72 = vadd.xlane.f32.xlu0 %v71
  %v73 = vpop.xlane.xlu0 %72
  %v74 = vlaneseq
  %v75 = vshrl.u32 %v74, 7
  %v76 = vsub.s32 0, %v75
  %v77 = vrot.slane %v66, %v76
  %v78 = vadd.f32 %v73, %v77
  %v79 = vmul.f32 %v78, 0.16666667
  %v80 = vadd.f32 %v79, 0.5
  %v81 = vmax.f32 %v80, 0.0
  %v82 = vmin.f32 %v81, 1.0
  %vm83 = vcmask 7168
  %84 = vst.msk [vmem:[%s2] sm:$0xff] %vm83, %v82
  // Predicated region
  $region10: #{forward.1} parent=0 // pred_check
    _
  $region11: #{forward.1} parent=0 // pred_check_branch
    %86 = sbr.rel (0) target = $region13
  $region12: #{forward.1} parent=0 // pred_region
    _
  $region13: #{forward.1} parent=0 // pred_fallthru
    _
  // Predicated region
  $region14: #{forward.1} parent=0 // pred_check
    _
  $region15: #{forward.1} parent=0 // pred_check_branch
    %88 = sbr.rel (0) target = $region17
  $region16: #{forward.1} parent=0 // pred_region
    _
  $region17: #{forward.1} parent=0 // pred_fallthru
    _

</llo_original>
